<compile_context>
chip_gen: v7x
topology: tpu7x:2x2x1
jax: 0.10.0
libtpu: 0.0.40
codegen_flags: <defaults>
</compile_context>

<pallas_src>
import jax
import jax.numpy as jnp
import numpy as np
from jax.experimental import pallas as pl
from jax.experimental.pallas import tpu as pltpu


def mtloss_kernel(clog_ref, tlog_ref, ctgt_ref, ttgt_ref,
                  ph_ref, th_ref, pc_ref, tc_ref, ls_ref, out_ref):
    f32 = jnp.float32

    # ---- classification heads: weighted CE, batch mean folded in -----------
    def ce_mean(logits_ref, tgt_ref, class_w):
        logits = logits_ref[...].astype(f32)                 # (B, C)
        tgt = tgt_ref[...]                                    # (B, 1) int32
        m = jnp.max(logits, axis=-1, keepdims=True)
        lse = jnp.log(jnp.sum(jnp.exp(logits - m), axis=-1, keepdims=True)) + m
        logp = logits - lse
        onehot = (jax.lax.broadcasted_iota(jnp.int32, logits.shape, 1)
                  == tgt).astype(f32)
        picked = jnp.sum(onehot * logp, axis=-1, keepdims=True)      # (B, 1)
        # uniform class weight -> fold -w after the (linear) batch mean
        return (-class_w) * jnp.mean(picked, axis=0, keepdims=True)  # (1, 1)

    tlc = ce_mean(clog_ref, ctgt_ref, 0.25)     # country head, weight 1/4
    tlt = ce_mean(tlog_ref, ttgt_ref, 0.125)    # type head,    weight 1/8

    # ---- regression heads: batch-mean CCC -----------------------------------
    def ccc_mean(p_ref, t_ref):
        p = p_ref[...].astype(f32)                            # (B, T)
        t = t_ref[...].astype(f32)
        n = p.shape[-1]
        mu_p = jnp.mean(p, axis=-1, keepdims=True)
        mu_t = jnp.mean(t, axis=-1, keepdims=True)
        dp = p - mu_p
        dt = t - mu_t
        var_p = jnp.sum(dp * dp, axis=-1, keepdims=True) * (1.0 / (n - 1))
        var_t = jnp.sum(dt * dt, axis=-1, keepdims=True) * (1.0 / (n - 1))
        cov = jnp.sum(dp * dt, axis=-1, keepdims=True) * (1.0 / n)
        c = 2.0 * cov / (var_p + var_t + (mu_p - mu_t) ** 2)  # (B, 1)
        return jnp.mean(c, axis=0, keepdims=True)             # (1, 1)

    cchi_m = ccc_mean(ph_ref, th_ref)
    cccu_m = ccc_mean(pc_ref, tc_ref)
    # batch means of loss_hi / loss_cu derived from the CCC means (mean is linear)
    tlhi = 1.0 - cchi_m
    tlcu = 1.0 - cccu_m

    # ---- uncertainty weighting: ONE EUP exp for weights AND uncertainties ---
    ls0 = ls_ref[0]
    ls1 = ls_ref[1]
    ls2 = ls_ref[2]
    ls3 = ls_ref[3]
    ls_sum = ls0 + ls1 + ls2 + ls3                            # scalar

    lanes = out_ref.shape[1]
    lane = jax.lax.broadcasted_iota(jnp.int32, (1, lanes), 1)

    # lanes 7-10 <- -2*log_std (task weights), lanes 11-14 <- log_std (uncert.)
    arg = jnp.zeros((1, lanes), f32)
    arg = jnp.where(lane == 7, -2.0 * ls0, arg)
    arg = jnp.where(lane == 8, -2.0 * ls1, arg)
    arg = jnp.where(lane == 9, -2.0 * ls2, arg)
    arg = jnp.where(lane == 10, -2.0 * ls3, arg)
    arg = jnp.where(lane == 11, ls0, arg)
    arg = jnp.where(lane == 12, ls1, arg)
    arg = jnp.where(lane == 13, ls2, arg)
    arg = jnp.where(lane == 14, ls3, arg)
    wu = jnp.exp(arg)                                         # single (1,128) exp
    wu = jnp.where((lane >= 7) & (lane <= 14), wu, 0.0)       # zero the rest

    # weighted task-loss sum: place the 4 task losses at the weight lanes and
    # lane-reduce the product (all other lanes contribute 0).
    tlw = jnp.zeros((1, lanes), f32)
    tlw = jnp.where(lane == 7, tlc, tlw)
    tlw = jnp.where(lane == 8, tlt, tlw)
    tlw = jnp.where(lane == 9, tlhi, tlw)
    tlw = jnp.where(lane == 10, tlcu, tlw)
    loss_m = jnp.sum(tlw * wu, axis=-1, keepdims=True) + ls_sum   # (1, 1)

    # ---- single lane-dense (1, 128) output, one store ------------------------
    # lane 0: loss | 1-4: task_loss | 5: ccc_hi | 6: ccc_cu
    # 7-10: task_weight | 11-14: task_uncertainty (already present in `wu`)
    out = wu
    out = jnp.where(lane == 0, loss_m, out)
    out = jnp.where(lane == 1, tlc, out)
    out = jnp.where(lane == 2, tlt, out)
    out = jnp.where(lane == 3, tlhi, out)
    out = jnp.where(lane == 4, tlcu, out)
    out = jnp.where(lane == 5, cchi_m, out)
    out = jnp.where(lane == 6, cccu_m, out)
    out_ref[...] = out


def mt_loss(predict, target, log_std):
    """Forward of MTLoss (CE weights from __init__: 1/4 and 1/8)."""
    f32 = jnp.float32
    B = predict['country'].shape[0]

    # Only trivially small wrapper ops remain (int cast / (B,)->(B,1) reshape).
    c_tgt = target['country'].astype(jnp.int32).reshape(B, 1)
    t_tgt = target['type'].astype(jnp.int32).reshape(B, 1)
    log_std_f = log_std.astype(f32)

    vmem = pl.BlockSpec(memory_space=pltpu.MemorySpace.VMEM)
    smem = pl.BlockSpec(memory_space=pltpu.MemorySpace.SMEM)

    reg_bytes = 2 * sum(int(np.prod(predict[k].shape)) * predict[k].dtype.itemsize
                        for k in ('high', 'culture'))
    vmem_limit = int(min(100 * 1024 * 1024, max(16 * 1024 * 1024, 8 * reg_bytes)))

    packed = pl.pallas_call(
        mtloss_kernel,
        out_shape=jax.ShapeDtypeStruct((1, 128), f32),
        in_specs=[vmem, vmem, vmem, vmem, vmem, vmem, vmem, vmem, smem],
        out_specs=vmem,
        compiler_params=pltpu.CompilerParams(vmem_limit_bytes=vmem_limit),
    )(predict['country'], predict['type'], c_tgt, t_tgt,
      predict['high'], target['high'], predict['culture'], target['culture'],
      log_std_f)

    row = packed[0]
    return {
        'loss': row[0],
        'task_loss': row[1:5],
        'task_weight': row[7:11],
        'task_uncertainty': row[11:15],
        'ccc_hi': row[5],
        'ccc_cu': row[6],
    }


def mt_loss_reference(predict, target, log_std):
    """Pure-JAX reference mirroring the PyTorch forward."""
    def ce(logits, tgt, w):
        logp = jax.nn.log_softmax(logits, axis=-1)
        picked = jnp.take_along_axis(logp, tgt[:, None], axis=-1)[:, 0]
        return -w[tgt] * picked

    def ccc(p, t):
        mu_p = p.mean(-1, keepdims=True)
        mu_t = t.mean(-1, keepdims=True)
        var_p = jnp.var(p, axis=-1, ddof=1, keepdims=True)
        var_t = jnp.var(t, axis=-1, ddof=1, keepdims=True)
        cov = ((p - mu_p) * (t - mu_t)).mean(-1, keepdims=True)
        return (2 * cov / (var_p + var_t + (mu_p - mu_t) ** 2))[:, 0]

    w_c = jnp.full((4,), 0.25)
    w_t = jnp.full((8,), 0.125)
    loss_c = ce(predict['country'], target['country'], w_c)
    loss_t = ce(predict['type'], target['type'], w_t)
    loss_hi = 1.0 - ccc(predict['high'], target['high'])
    loss_cu = 1.0 - ccc(predict['culture'], target['culture'])
    loss = jnp.stack((loss_c, loss_t, loss_hi, loss_cu)).T
    weight = jnp.exp(-2.0 * log_std)
    ret = (loss @ weight + log_std.sum()).mean()
    return {'loss': ret, 'task_loss': loss.mean(0), 'task_weight': weight,
            'task_uncertainty': jnp.exp(log_std),
            'ccc_hi': (1 - loss_hi).mean(), 'ccc_cu': (1 - loss_cu).mean()}


if __name__ == "__main__":
    B, T = 8, 128
    key = jax.random.PRNGKey(0)
    k1, k2, k3, k4, k5, k6, k7, k8 = jax.random.split(key, 8)

    predict = {
        'country': jax.random.normal(k1, (B, 4), jnp.float32),
        'type':    jax.random.normal(k2, (B, 8), jnp.float32),
        'high':    jax.random.normal(k3, (B, T), jnp.float32),
        'culture': jax.random.normal(k4, (B, T), jnp.float32),
    }
    target = {
        'country': jax.random.randint(k5, (B,), 0, 4, jnp.int32),
        'type':    jax.random.randint(k6, (B,), 0, 8, jnp.int32),
        'high':    jax.random.normal(k7, (B, T), jnp.float32),
        'culture': jax.random.normal(k8, (B, T), jnp.float32),
    }
    # nn.Parameter(torch.zeros(4)) — deterministic init
    log_std = jnp.zeros((4,), jnp.float32)

    out = jax.jit(mt_loss)(predict, target, log_std)
    out = jax.block_until_ready(out)

    ref = mt_loss_reference(predict, target, log_std)
    np.testing.assert_allclose(np.asarray(out['loss']), np.asarray(ref['loss']),
                               rtol=1e-4, atol=1e-5)
    np.testing.assert_allclose(np.asarray(out['task_loss']),
                               np.asarray(ref['task_loss']), rtol=1e-4, atol=1e-5)
    np.testing.assert_allclose(np.asarray(out['task_weight']),
                               np.asarray(ref['task_weight']), rtol=1e-4, atol=1e-5)
    np.testing.assert_allclose(np.asarray(out['task_uncertainty']),
                               np.asarray(ref['task_uncertainty']), rtol=1e-4, atol=1e-5)
    np.testing.assert_allclose(np.asarray(out['ccc_hi']), np.asarray(ref['ccc_hi']),
                               rtol=1e-4, atol=1e-5)
    np.testing.assert_allclose(np.asarray(out['ccc_cu']), np.asarray(ref['ccc_cu']),
                               rtol=1e-4, atol=1e-5)

    print("KERNEL_OK")
</pallas_src>

<mosaic_0001>
module attributes {stable_mosaic.version = 11 : i64} {
  func.func @mtloss_kernel(%arg0: memref<8x4xf32, #tpu.memory_space<vmem>>, %arg1: memref<8x8xf32, #tpu.memory_space<vmem>>, %arg2: memref<8x1xi32, #tpu.memory_space<vmem>>, %arg3: memref<8x1xi32, #tpu.memory_space<vmem>>, %arg4: memref<8x128xf32, #tpu.memory_space<vmem>>, %arg5: memref<8x128xf32, #tpu.memory_space<vmem>>, %arg6: memref<8x128xf32, #tpu.memory_space<vmem>>, %arg7: memref<8x128xf32, #tpu.memory_space<vmem>>, %arg8: memref<4xf32, #tpu.memory_space<smem>>, %arg9: memref<1x128xf32, #tpu.memory_space<vmem>>) attributes {dimension_semantics = [], scalar_prefetch = 0 : i64, scratch_operands = 0 : i64, tpu.core_type = #tpu.core_type<tc>} {
    %c0 = arith.constant 0 : index
    %c0_0 = arith.constant 0 : index
    %0 = vector.load %arg0[%c0, %c0_0] : memref<8x4xf32, #tpu.memory_space<vmem>>, vector<8x4xf32>
    %c0_1 = arith.constant 0 : index
    %c0_2 = arith.constant 0 : index
    %1 = vector.load %arg2[%c0_1, %c0_2] : memref<8x1xi32, #tpu.memory_space<vmem>>, vector<8x1xi32>
    %cst = arith.constant dense<0xFF800000> : vector<8xf32>
    %2 = vector.multi_reduction <maximumf>, %0, %cst [1] : vector<8x4xf32> to vector<8xf32>
    %3 = vector.shape_cast %2 : vector<8xf32> to vector<8x1xf32>
    %4 = vector.broadcast %3 : vector<8x1xf32> to vector<8x4xf32>
    %5 = arith.subf %0, %4 : vector<8x4xf32>
    %6 = math.exp %5 : vector<8x4xf32>
    %cst_3 = arith.constant dense<0.000000e+00> : vector<8xf32>
    %7 = vector.multi_reduction <add>, %6, %cst_3 [1] : vector<8x4xf32> to vector<8xf32>
    %8 = vector.shape_cast %7 : vector<8xf32> to vector<8x1xf32>
    %9 = math.log %8 : vector<8x1xf32>
    %10 = arith.addf %9, %3 : vector<8x1xf32>
    %11 = vector.broadcast %10 : vector<8x1xf32> to vector<8x4xf32>
    %12 = arith.subf %0, %11 : vector<8x4xf32>
    %13 = tpu.iota {dimensions = array<i32: 1>} : vector<8x4xi32>
    %14 = vector.broadcast %1 : vector<8x1xi32> to vector<8x4xi32>
    %15 = arith.cmpi eq, %13, %14 : vector<8x4xi32>
    %16 = arith.extui %15 : vector<8x4xi1> to vector<8x4xi32>
    %17 = arith.sitofp %16 : vector<8x4xi32> to vector<8x4xf32>
    %18 = arith.mulf %17, %12 : vector<8x4xf32>
    %cst_4 = arith.constant dense<0.000000e+00> : vector<8xf32>
    %19 = vector.multi_reduction <add>, %18, %cst_4 [1] : vector<8x4xf32> to vector<8xf32>
    %20 = vector.shape_cast %19 : vector<8xf32> to vector<8x1xf32>
    %cst_5 = arith.constant dense<0.000000e+00> : vector<1xf32>
    %21 = vector.multi_reduction <add>, %20, %cst_5 [0] : vector<8x1xf32> to vector<1xf32>
    %22 = vector.shape_cast %21 : vector<1xf32> to vector<1x1xf32>
    %cst_6 = arith.constant 8.000000e+00 : f32
    %23 = vector.broadcast %cst_6 : f32 to vector<1x1xf32>
    %24 = arith.divf %22, %23 : vector<1x1xf32>
    %cst_7 = arith.constant -2.500000e-01 : f32
    %25 = vector.broadcast %cst_7 : f32 to vector<1x1xf32>
    %26 = arith.mulf %25, %24 : vector<1x1xf32>
    %c0_8 = arith.constant 0 : index
    %c0_9 = arith.constant 0 : index
    %27 = vector.load %arg1[%c0_8, %c0_9] : memref<8x8xf32, #tpu.memory_space<vmem>>, vector<8x8xf32>
    %c0_10 = arith.constant 0 : index
    %c0_11 = arith.constant 0 : index
    %28 = vector.load %arg3[%c0_10, %c0_11] : memref<8x1xi32, #tpu.memory_space<vmem>>, vector<8x1xi32>
    %cst_12 = arith.constant dense<0xFF800000> : vector<8xf32>
    %29 = vector.multi_reduction <maximumf>, %27, %cst_12 [1] : vector<8x8xf32> to vector<8xf32>
    %30 = vector.shape_cast %29 : vector<8xf32> to vector<8x1xf32>
    %31 = vector.broadcast %30 : vector<8x1xf32> to vector<8x8xf32>
    %32 = arith.subf %27, %31 : vector<8x8xf32>
    %33 = math.exp %32 : vector<8x8xf32>
    %cst_13 = arith.constant dense<0.000000e+00> : vector<8xf32>
    %34 = vector.multi_reduction <add>, %33, %cst_13 [1] : vector<8x8xf32> to vector<8xf32>
    %35 = vector.shape_cast %34 : vector<8xf32> to vector<8x1xf32>
    %36 = math.log %35 : vector<8x1xf32>
    %37 = arith.addf %36, %30 : vector<8x1xf32>
    %38 = vector.broadcast %37 : vector<8x1xf32> to vector<8x8xf32>
    %39 = arith.subf %27, %38 : vector<8x8xf32>
    %40 = tpu.iota {dimensions = array<i32: 1>} : vector<8x8xi32>
    %41 = vector.broadcast %28 : vector<8x1xi32> to vector<8x8xi32>
    %42 = arith.cmpi eq, %40, %41 : vector<8x8xi32>
    %43 = arith.extui %42 : vector<8x8xi1> to vector<8x8xi32>
    %44 = arith.sitofp %43 : vector<8x8xi32> to vector<8x8xf32>
    %45 = arith.mulf %44, %39 : vector<8x8xf32>
    %cst_14 = arith.constant dense<0.000000e+00> : vector<8xf32>
    %46 = vector.multi_reduction <add>, %45, %cst_14 [1] : vector<8x8xf32> to vector<8xf32>
    %47 = vector.shape_cast %46 : vector<8xf32> to vector<8x1xf32>
    %cst_15 = arith.constant dense<0.000000e+00> : vector<1xf32>
    %48 = vector.multi_reduction <add>, %47, %cst_15 [0] : vector<8x1xf32> to vector<1xf32>
    %49 = vector.shape_cast %48 : vector<1xf32> to vector<1x1xf32>
    %cst_16 = arith.constant 8.000000e+00 : f32
    %50 = vector.broadcast %cst_16 : f32 to vector<1x1xf32>
    %51 = arith.divf %49, %50 : vector<1x1xf32>
    %cst_17 = arith.constant -1.250000e-01 : f32
    %52 = vector.broadcast %cst_17 : f32 to vector<1x1xf32>
    %53 = arith.mulf %52, %51 : vector<1x1xf32>
    %c0_18 = arith.constant 0 : index
    %c0_19 = arith.constant 0 : index
    %54 = vector.load %arg4[%c0_18, %c0_19] : memref<8x128xf32, #tpu.memory_space<vmem>>, vector<8x128xf32>
    %c0_20 = arith.constant 0 : index
    %c0_21 = arith.constant 0 : index
    %55 = vector.load %arg5[%c0_20, %c0_21] : memref<8x128xf32, #tpu.memory_space<vmem>>, vector<8x128xf32>
    %cst_22 = arith.constant dense<0.000000e+00> : vector<8xf32>
    %56 = vector.multi_reduction <add>, %54, %cst_22 [1] : vector<8x128xf32> to vector<8xf32>
    %57 = vector.shape_cast %56 : vector<8xf32> to vector<8x1xf32>
    %cst_23 = arith.constant 1.280000e+02 : f32
    %58 = vector.broadcast %cst_23 : f32 to vector<8x1xf32>
    %59 = arith.divf %57, %58 : vector<8x1xf32>
    %cst_24 = arith.constant dense<0.000000e+00> : vector<8xf32>
    %60 = vector.multi_reduction <add>, %55, %cst_24 [1] : vector<8x128xf32> to vector<8xf32>
    %61 = vector.shape_cast %60 : vector<8xf32> to vector<8x1xf32>
    %cst_25 = arith.constant 1.280000e+02 : f32
    %62 = vector.broadcast %cst_25 : f32 to vector<8x1xf32>
    %63 = arith.divf %61, %62 : vector<8x1xf32>
    %64 = vector.broadcast %59 : vector<8x1xf32> to vector<8x128xf32>
    %65 = arith.subf %54, %64 : vector<8x128xf32>
    %66 = vector.broadcast %63 : vector<8x1xf32> to vector<8x128xf32>
    %67 = arith.subf %55, %66 : vector<8x128xf32>
    %68 = arith.mulf %65, %65 : vector<8x128xf32>
    %cst_26 = arith.constant dense<0.000000e+00> : vector<8xf32>
    %69 = vector.multi_reduction <add>, %68, %cst_26 [1] : vector<8x128xf32> to vector<8xf32>
    %70 = vector.shape_cast %69 : vector<8xf32> to vector<8x1xf32>
    %cst_27 = arith.constant 0.00787401571 : f32
    %71 = vector.broadcast %cst_27 : f32 to vector<8x1xf32>
    %72 = arith.mulf %70, %71 : vector<8x1xf32>
    %73 = arith.mulf %67, %67 : vector<8x128xf32>
    %cst_28 = arith.constant dense<0.000000e+00> : vector<8xf32>
    %74 = vector.multi_reduction <add>, %73, %cst_28 [1] : vector<8x128xf32> to vector<8xf32>
    %75 = vector.shape_cast %74 : vector<8xf32> to vector<8x1xf32>
    %cst_29 = arith.constant 0.00787401571 : f32
    %76 = vector.broadcast %cst_29 : f32 to vector<8x1xf32>
    %77 = arith.mulf %75, %76 : vector<8x1xf32>
    %78 = arith.mulf %65, %67 : vector<8x128xf32>
    %cst_30 = arith.constant dense<0.000000e+00> : vector<8xf32>
    %79 = vector.multi_reduction <add>, %78, %cst_30 [1] : vector<8x128xf32> to vector<8xf32>
    %80 = vector.shape_cast %79 : vector<8xf32> to vector<8x1xf32>
    %cst_31 = arith.constant 7.812500e-03 : f32
    %81 = vector.broadcast %cst_31 : f32 to vector<8x1xf32>
    %82 = arith.mulf %80, %81 : vector<8x1xf32>
    %cst_32 = arith.constant 2.000000e+00 : f32
    %83 = vector.broadcast %cst_32 : f32 to vector<8x1xf32>
    %84 = arith.mulf %83, %82 : vector<8x1xf32>
    %85 = arith.addf %72, %77 : vector<8x1xf32>
    %86 = arith.subf %59, %63 : vector<8x1xf32>
    %87 = arith.mulf %86, %86 : vector<8x1xf32>
    %88 = arith.addf %85, %87 : vector<8x1xf32>
    %89 = arith.divf %84, %88 : vector<8x1xf32>
    %cst_33 = arith.constant dense<0.000000e+00> : vector<1xf32>
    %90 = vector.multi_reduction <add>, %89, %cst_33 [0] : vector<8x1xf32> to vector<1xf32>
    %91 = vector.shape_cast %90 : vector<1xf32> to vector<1x1xf32>
    %cst_34 = arith.constant 8.000000e+00 : f32
    %92 = vector.broadcast %cst_34 : f32 to vector<1x1xf32>
    %93 = arith.divf %91, %92 : vector<1x1xf32>
    %c0_35 = arith.constant 0 : index
    %c0_36 = arith.constant 0 : index
    %94 = vector.load %arg6[%c0_35, %c0_36] : memref<8x128xf32, #tpu.memory_space<vmem>>, vector<8x128xf32>
    %c0_37 = arith.constant 0 : index
    %c0_38 = arith.constant 0 : index
    %95 = vector.load %arg7[%c0_37, %c0_38] : memref<8x128xf32, #tpu.memory_space<vmem>>, vector<8x128xf32>
    %cst_39 = arith.constant dense<0.000000e+00> : vector<8xf32>
    %96 = vector.multi_reduction <add>, %94, %cst_39 [1] : vector<8x128xf32> to vector<8xf32>
    %97 = vector.shape_cast %96 : vector<8xf32> to vector<8x1xf32>
    %cst_40 = arith.constant 1.280000e+02 : f32
    %98 = vector.broadcast %cst_40 : f32 to vector<8x1xf32>
    %99 = arith.divf %97, %98 : vector<8x1xf32>
    %cst_41 = arith.constant dense<0.000000e+00> : vector<8xf32>
    %100 = vector.multi_reduction <add>, %95, %cst_41 [1] : vector<8x128xf32> to vector<8xf32>
    %101 = vector.shape_cast %100 : vector<8xf32> to vector<8x1xf32>
    %cst_42 = arith.constant 1.280000e+02 : f32
    %102 = vector.broadcast %cst_42 : f32 to vector<8x1xf32>
    %103 = arith.divf %101, %102 : vector<8x1xf32>
    %104 = vector.broadcast %99 : vector<8x1xf32> to vector<8x128xf32>
    %105 = arith.subf %94, %104 : vector<8x128xf32>
    %106 = vector.broadcast %103 : vector<8x1xf32> to vector<8x128xf32>
    %107 = arith.subf %95, %106 : vector<8x128xf32>
    %108 = arith.mulf %105, %105 : vector<8x128xf32>
    %cst_43 = arith.constant dense<0.000000e+00> : vector<8xf32>
    %109 = vector.multi_reduction <add>, %108, %cst_43 [1] : vector<8x128xf32> to vector<8xf32>
    %110 = vector.shape_cast %109 : vector<8xf32> to vector<8x1xf32>
    %cst_44 = arith.constant 0.00787401571 : f32
    %111 = vector.broadcast %cst_44 : f32 to vector<8x1xf32>
    %112 = arith.mulf %110, %111 : vector<8x1xf32>
    %113 = arith.mulf %107, %107 : vector<8x128xf32>
    %cst_45 = arith.constant dense<0.000000e+00> : vector<8xf32>
    %114 = vector.multi_reduction <add>, %113, %cst_45 [1] : vector<8x128xf32> to vector<8xf32>
    %115 = vector.shape_cast %114 : vector<8xf32> to vector<8x1xf32>
    %cst_46 = arith.constant 0.00787401571 : f32
    %116 = vector.broadcast %cst_46 : f32 to vector<8x1xf32>
    %117 = arith.mulf %115, %116 : vector<8x1xf32>
    %118 = arith.mulf %105, %107 : vector<8x128xf32>
    %cst_47 = arith.constant dense<0.000000e+00> : vector<8xf32>
    %119 = vector.multi_reduction <add>, %118, %cst_47 [1] : vector<8x128xf32> to vector<8xf32>
    %120 = vector.shape_cast %119 : vector<8xf32> to vector<8x1xf32>
    %cst_48 = arith.constant 7.812500e-03 : f32
    %121 = vector.broadcast %cst_48 : f32 to vector<8x1xf32>
    %122 = arith.mulf %120, %121 : vector<8x1xf32>
    %cst_49 = arith.constant 2.000000e+00 : f32
    %123 = vector.broadcast %cst_49 : f32 to vector<8x1xf32>
    %124 = arith.mulf %123, %122 : vector<8x1xf32>
    %125 = arith.addf %112, %117 : vector<8x1xf32>
    %126 = arith.subf %99, %103 : vector<8x1xf32>
    %127 = arith.mulf %126, %126 : vector<8x1xf32>
    %128 = arith.addf %125, %127 : vector<8x1xf32>
    %129 = arith.divf %124, %128 : vector<8x1xf32>
    %cst_50 = arith.constant dense<0.000000e+00> : vector<1xf32>
    %130 = vector.multi_reduction <add>, %129, %cst_50 [0] : vector<8x1xf32> to vector<1xf32>
    %131 = vector.shape_cast %130 : vector<1xf32> to vector<1x1xf32>
    %cst_51 = arith.constant 8.000000e+00 : f32
    %132 = vector.broadcast %cst_51 : f32 to vector<1x1xf32>
    %133 = arith.divf %131, %132 : vector<1x1xf32>
    %cst_52 = arith.constant 1.000000e+00 : f32
    %134 = vector.broadcast %cst_52 : f32 to vector<1x1xf32>
    %135 = arith.subf %134, %93 : vector<1x1xf32>
    %cst_53 = arith.constant 1.000000e+00 : f32
    %136 = vector.broadcast %cst_53 : f32 to vector<1x1xf32>
    %137 = arith.subf %136, %133 : vector<1x1xf32>
    %c0_54 = arith.constant 0 : index
    %138 = memref.load %arg8[%c0_54] : memref<4xf32, #tpu.memory_space<smem>>
    %c1 = arith.constant 1 : index
    %139 = memref.load %arg8[%c1] : memref<4xf32, #tpu.memory_space<smem>>
    %c2 = arith.constant 2 : index
    %140 = memref.load %arg8[%c2] : memref<4xf32, #tpu.memory_space<smem>>
    %c3 = arith.constant 3 : index
    %141 = memref.load %arg8[%c3] : memref<4xf32, #tpu.memory_space<smem>>
    %142 = arith.addf %138, %139 : f32
    %143 = arith.addf %142, %140 : f32
    %144 = arith.addf %143, %141 : f32
    %145 = tpu.iota {dimensions = array<i32: 1>} : vector<1x128xi32>
    %cst_55 = arith.constant 0.000000e+00 : f32
    %146 = vector.broadcast %cst_55 : f32 to vector<1x128xf32>
    %c7_i32 = arith.constant 7 : i32
    %147 = vector.broadcast %c7_i32 : i32 to vector<1x128xi32>
    %148 = arith.cmpi eq, %145, %147 : vector<1x128xi32>
    %cst_56 = arith.constant -2.000000e+00 : f32
    %149 = arith.mulf %cst_56, %138 : f32
    %150 = vector.broadcast %149 : f32 to vector<1x128xf32>
    %151 = arith.select %148, %150, %146 : vector<1x128xi1>, vector<1x128xf32>
    %c8_i32 = arith.constant 8 : i32
    %152 = vector.broadcast %c8_i32 : i32 to vector<1x128xi32>
    %153 = arith.cmpi eq, %145, %152 : vector<1x128xi32>
    %cst_57 = arith.constant -2.000000e+00 : f32
    %154 = arith.mulf %cst_57, %139 : f32
    %155 = vector.broadcast %154 : f32 to vector<1x128xf32>
    %156 = arith.select %153, %155, %151 : vector<1x128xi1>, vector<1x128xf32>
    %c9_i32 = arith.constant 9 : i32
    %157 = vector.broadcast %c9_i32 : i32 to vector<1x128xi32>
    %158 = arith.cmpi eq, %145, %157 : vector<1x128xi32>
    %cst_58 = arith.constant -2.000000e+00 : f32
    %159 = arith.mulf %cst_58, %140 : f32
    %160 = vector.broadcast %159 : f32 to vector<1x128xf32>
    %161 = arith.select %158, %160, %156 : vector<1x128xi1>, vector<1x128xf32>
    %c10_i32 = arith.constant 10 : i32
    %162 = vector.broadcast %c10_i32 : i32 to vector<1x128xi32>
    %163 = arith.cmpi eq, %145, %162 : vector<1x128xi32>
    %cst_59 = arith.constant -2.000000e+00 : f32
    %164 = arith.mulf %cst_59, %141 : f32
    %165 = vector.broadcast %164 : f32 to vector<1x128xf32>
    %166 = arith.select %163, %165, %161 : vector<1x128xi1>, vector<1x128xf32>
    %c11_i32 = arith.constant 11 : i32
    %167 = vector.broadcast %c11_i32 : i32 to vector<1x128xi32>
    %168 = arith.cmpi eq, %145, %167 : vector<1x128xi32>
    %169 = vector.broadcast %138 : f32 to vector<1x128xf32>
    %170 = arith.select %168, %169, %166 : vector<1x128xi1>, vector<1x128xf32>
    %c12_i32 = arith.constant 12 : i32
    %171 = vector.broadcast %c12_i32 : i32 to vector<1x128xi32>
    %172 = arith.cmpi eq, %145, %171 : vector<1x128xi32>
    %173 = vector.broadcast %139 : f32 to vector<1x128xf32>
    %174 = arith.select %172, %173, %170 : vector<1x128xi1>, vector<1x128xf32>
    %c13_i32 = arith.constant 13 : i32
    %175 = vector.broadcast %c13_i32 : i32 to vector<1x128xi32>
    %176 = arith.cmpi eq, %145, %175 : vector<1x128xi32>
    %177 = vector.broadcast %140 : f32 to vector<1x128xf32>
    %178 = arith.select %176, %177, %174 : vector<1x128xi1>, vector<1x128xf32>
    %c14_i32 = arith.constant 14 : i32
    %179 = vector.broadcast %c14_i32 : i32 to vector<1x128xi32>
    %180 = arith.cmpi eq, %145, %179 : vector<1x128xi32>
    %181 = vector.broadcast %141 : f32 to vector<1x128xf32>
    %182 = arith.select %180, %181, %178 : vector<1x128xi1>, vector<1x128xf32>
    %183 = math.exp %182 : vector<1x128xf32>
    %c7_i32_60 = arith.constant 7 : i32
    %184 = vector.broadcast %c7_i32_60 : i32 to vector<1x128xi32>
    %185 = arith.cmpi sge, %145, %184 : vector<1x128xi32>
    %c14_i32_61 = arith.constant 14 : i32
    %186 = vector.broadcast %c14_i32_61 : i32 to vector<1x128xi32>
    %187 = arith.cmpi sle, %145, %186 : vector<1x128xi32>
    %188 = arith.andi %185, %187 : vector<1x128xi1>
    %cst_62 = arith.constant 0.000000e+00 : f32
    %189 = vector.broadcast %cst_62 : f32 to vector<1x128xf32>
    %190 = arith.select %188, %183, %189 : vector<1x128xi1>, vector<1x128xf32>
    %cst_63 = arith.constant 0.000000e+00 : f32
    %191 = vector.broadcast %cst_63 : f32 to vector<1x128xf32>
    %c7_i32_64 = arith.constant 7 : i32
    %192 = vector.broadcast %c7_i32_64 : i32 to vector<1x128xi32>
    %193 = arith.cmpi eq, %145, %192 : vector<1x128xi32>
    %194 = vector.shape_cast %26 : vector<1x1xf32> to vector<1x1xf32>
    %195 = vector.broadcast %194 : vector<1x1xf32> to vector<1x128xf32>
    %196 = arith.select %193, %195, %191 : vector<1x128xi1>, vector<1x128xf32>
    %c8_i32_65 = arith.constant 8 : i32
    %197 = vector.broadcast %c8_i32_65 : i32 to vector<1x128xi32>
    %198 = arith.cmpi eq, %145, %197 : vector<1x128xi32>
    %199 = vector.shape_cast %53 : vector<1x1xf32> to vector<1x1xf32>
    %200 = vector.broadcast %199 : vector<1x1xf32> to vector<1x128xf32>
    %201 = arith.select %198, %200, %196 : vector<1x128xi1>, vector<1x128xf32>
    %c9_i32_66 = arith.constant 9 : i32
    %202 = vector.broadcast %c9_i32_66 : i32 to vector<1x128xi32>
    %203 = arith.cmpi eq, %145, %202 : vector<1x128xi32>
    %204 = vector.shape_cast %135 : vector<1x1xf32> to vector<1x1xf32>
    %205 = vector.broadcast %204 : vector<1x1xf32> to vector<1x128xf32>
    %206 = arith.select %203, %205, %201 : vector<1x128xi1>, vector<1x128xf32>
    %c10_i32_67 = arith.constant 10 : i32
    %207 = vector.broadcast %c10_i32_67 : i32 to vector<1x128xi32>
    %208 = arith.cmpi eq, %145, %207 : vector<1x128xi32>
    %209 = vector.shape_cast %137 : vector<1x1xf32> to vector<1x1xf32>
    %210 = vector.broadcast %209 : vector<1x1xf32> to vector<1x128xf32>
    %211 = arith.select %208, %210, %206 : vector<1x128xi1>, vector<1x128xf32>
    %212 = arith.mulf %211, %190 : vector<1x128xf32>
    %cst_68 = arith.constant dense<0.000000e+00> : vector<1xf32>
    %213 = vector.multi_reduction <add>, %212, %cst_68 [1] : vector<1x128xf32> to vector<1xf32>
    %214 = vector.shape_cast %213 : vector<1xf32> to vector<1x1xf32>
    %215 = vector.broadcast %144 : f32 to vector<1x1xf32>
    %216 = arith.addf %214, %215 : vector<1x1xf32>
    %c0_i32 = arith.constant 0 : i32
    %217 = vector.broadcast %c0_i32 : i32 to vector<1x128xi32>
    %218 = arith.cmpi eq, %145, %217 : vector<1x128xi32>
    %219 = vector.shape_cast %216 : vector<1x1xf32> to vector<1x1xf32>
    %220 = vector.broadcast %219 : vector<1x1xf32> to vector<1x128xf32>
    %221 = arith.select %218, %220, %190 : vector<1x128xi1>, vector<1x128xf32>
    %c1_i32 = arith.constant 1 : i32
    %222 = vector.broadcast %c1_i32 : i32 to vector<1x128xi32>
    %223 = arith.cmpi eq, %145, %222 : vector<1x128xi32>
    %224 = vector.shape_cast %26 : vector<1x1xf32> to vector<1x1xf32>
    %225 = vector.broadcast %224 : vector<1x1xf32> to vector<1x128xf32>
    %226 = arith.select %223, %225, %221 : vector<1x128xi1>, vector<1x128xf32>
    %c2_i32 = arith.constant 2 : i32
    %227 = vector.broadcast %c2_i32 : i32 to vector<1x128xi32>
    %228 = arith.cmpi eq, %145, %227 : vector<1x128xi32>
    %229 = vector.shape_cast %53 : vector<1x1xf32> to vector<1x1xf32>
    %230 = vector.broadcast %229 : vector<1x1xf32> to vector<1x128xf32>
    %231 = arith.select %228, %230, %226 : vector<1x128xi1>, vector<1x128xf32>
    %c3_i32 = arith.constant 3 : i32
    %232 = vector.broadcast %c3_i32 : i32 to vector<1x128xi32>
    %233 = arith.cmpi eq, %145, %232 : vector<1x128xi32>
    %234 = vector.shape_cast %135 : vector<1x1xf32> to vector<1x1xf32>
    %235 = vector.broadcast %234 : vector<1x1xf32> to vector<1x128xf32>
    %236 = arith.select %233, %235, %231 : vector<1x128xi1>, vector<1x128xf32>
    %c4_i32 = arith.constant 4 : i32
    %237 = vector.broadcast %c4_i32 : i32 to vector<1x128xi32>
    %238 = arith.cmpi eq, %145, %237 : vector<1x128xi32>
    %239 = vector.shape_cast %137 : vector<1x1xf32> to vector<1x1xf32>
    %240 = vector.broadcast %239 : vector<1x1xf32> to vector<1x128xf32>
    %241 = arith.select %238, %240, %236 : vector<1x128xi1>, vector<1x128xf32>
    %c5_i32 = arith.constant 5 : i32
    %242 = vector.broadcast %c5_i32 : i32 to vector<1x128xi32>
    %243 = arith.cmpi eq, %145, %242 : vector<1x128xi32>
    %244 = vector.shape_cast %93 : vector<1x1xf32> to vector<1x1xf32>
    %245 = vector.broadcast %244 : vector<1x1xf32> to vector<1x128xf32>
    %246 = arith.select %243, %245, %241 : vector<1x128xi1>, vector<1x128xf32>
    %c6_i32 = arith.constant 6 : i32
    %247 = vector.broadcast %c6_i32 : i32 to vector<1x128xi32>
    %248 = arith.cmpi eq, %145, %247 : vector<1x128xi32>
    %249 = vector.shape_cast %133 : vector<1x1xf32> to vector<1x1xf32>
    %250 = vector.broadcast %249 : vector<1x1xf32> to vector<1x128xf32>
    %251 = arith.select %248, %250, %246 : vector<1x128xi1>, vector<1x128xf32>
    %c0_69 = arith.constant 0 : index
    %c0_70 = arith.constant 0 : index
    %252 = vector.load %arg9[%c0_69, %c0_70] : memref<1x128xf32, #tpu.memory_space<vmem>>, vector<1x128xf32>
    tpu.vector_store %arg9[%c0_69, %c0_70], %251 {strides = array<i32>} : memref<1x128xf32, #tpu.memory_space<vmem>>, vector<1x128xf32>,
    return
  }
}

</mosaic_0001>

<llo_original>
// kernel: mt_loss.1
$region0: #{mt_loss.1}
  #allocation0 [shape = 'u32[]', space=smem, size = 0x4, offset = 0x4, fixed_abs, tag = 'smem constant byte address 0x4 - core index']
  #allocation1 [shape = 'u32[144,128]{1,0:T(1,128)}', space=vmem, size = 0x12000, scoped, tag = 'internal scratch']
  %s0 = inlined_call_operand.vmem [shape: f32[8,4], index: 0, kind: input, shape index: {}]
  %s1 = inlined_call_operand.vmem [shape: f32[8,8], index: 1, kind: input, shape index: {}]
  %s2 = inlined_call_operand.vmem [shape: s32[8,1], index: 2, kind: input, shape index: {}]
  %s3 = inlined_call_operand.vmem [shape: s32[8,1], index: 3, kind: input, shape index: {}]
  %s4 = inlined_call_operand.vmem [shape: f32[8,128], index: 4, kind: input, shape index: {}]
  %s5 = inlined_call_operand.vmem [shape: f32[8,128], index: 5, kind: input, shape index: {}]
  %s6 = inlined_call_operand.vmem [shape: f32[8,128], index: 6, kind: input, shape index: {}]
  %s7 = inlined_call_operand.vmem [shape: f32[8,128], index: 7, kind: input, shape index: {}]
  %s8 = inlined_call_operand.vmem [shape: f32[4], index: 8, kind: input, shape index: {}]
  %s9 = inlined_call_operand.vmem [shape: f32[1,128], index: 9, kind: output, shape index: {}]
  %s10 = sld [smem:[#allocation0]]
  $region50: #{mt_loss.1} parent=0
    _
  %s12 = ssub.s32 1, %s10
  %s13 = scalar_select 0, %s12, %s10
  $region1: #{mt_loss.1} parent=0
    #allocation2 [shape = 'u8[512]{0}', space=smem, size = 0x200, scoped, tag = 'input window, operand 8, single buffered']
    #allocation3 [shape = 's32[1]{0}', space=sflag, size = 0x4, scoped, tag = 'scoped memory for mt_loss.1']
    %14 = vsyncpa [#allocation3], 0
    // Predicated region
    $region2: #{mt_loss.1} parent=1 // pred_check
      _
    $region3: #{mt_loss.1} parent=1 // pred_check_branch
      %16 = sbr.rel (0) target = $region5
    $region4: #{mt_loss.1} parent=1 // pred_region
      _
    $region5: #{mt_loss.1} parent=1 // pred_fallthru
      _
    // Predicated region
    $region6: #{mt_loss.1} parent=1 // pred_check
      _
    $region7: #{mt_loss.1} parent=1 // pred_check_branch
      %18 = sbr.rel (0) target = $region9
    $region8: #{mt_loss.1} parent=1 // pred_region
      _
    $region9: #{mt_loss.1} parent=1 // pred_fallthru
      _
    // Predicated region
    $region10: #{mt_loss.1} parent=1 // pred_check
      _
    $region11: #{mt_loss.1} parent=1 // pred_check_branch
      %20 = sbr.rel (0) target = $region13
    $region12: #{mt_loss.1} parent=1 // pred_region
      _
    $region13: #{mt_loss.1} parent=1 // pred_fallthru
      _
    // Predicated region
    $region14: #{mt_loss.1} parent=1 // pred_check
      _
    $region15: #{mt_loss.1} parent=1 // pred_check_branch
      %22 = sbr.rel (0) target = $region17
    $region16: #{mt_loss.1} parent=1 // pred_region
      _
    $region17: #{mt_loss.1} parent=1 // pred_fallthru
      _
    // Predicated region
    $region18: #{mt_loss.1} parent=1 // pred_check
      _
    $region19: #{mt_loss.1} parent=1 // pred_check_branch
      %24 = sbr.rel (0) target = $region21
    $region20: #{mt_loss.1} parent=1 // pred_region
      _
    $region21: #{mt_loss.1} parent=1 // pred_fallthru
      _
    // Predicated region
    $region22: #{mt_loss.1} parent=1 // pred_check
      _
    $region23: #{mt_loss.1} parent=1 // pred_check_branch
      %26 = sbr.rel (0) target = $region25
    $region24: #{mt_loss.1} parent=1 // pred_region
      _
    $region25: #{mt_loss.1} parent=1 // pred_fallthru
      _
    // Predicated region
    $region26: #{mt_loss.1} parent=1 // pred_check
      _
    $region27: #{mt_loss.1} parent=1 // pred_check_branch
      %28 = sbr.rel (0) target = $region29
    $region28: #{mt_loss.1} parent=1 // pred_region
      _
    $region29: #{mt_loss.1} parent=1 // pred_fallthru
      _
    // Predicated region
    $region30: #{mt_loss.1} parent=1 // pred_check
      _
    $region31: #{mt_loss.1} parent=1 // pred_check_branch
      %30 = sbr.rel (0) target = $region33
    $region32: #{mt_loss.1} parent=1 // pred_region
      _
    $region33: #{mt_loss.1} parent=1 // pred_fallthru
      _
    // Predicated region
    $region34: #{mt_loss.1} parent=1 // pred_check
      _
    $region35: #{mt_loss.1} parent=1 // pred_check_branch
      %32 = sbr.rel (0) target = $region37
    $region36: #{mt_loss.1} parent=1 // pred_region
      %s34 = ssub.s32 16, 16
      %35 = vsyncadd [#allocation3], %s34
      %s37 = sshll.u32 %s8, 4
      %s38 = int_to_ptr.vmem [resolvable:$true] %s37
      %40 = dma.vmem_to_smem %s38, 16, [#allocation2], [#allocation3]
    $region37: #{mt_loss.1} parent=1 // pred_fallthru
      _
    // Predicated region
    $region38: #{mt_loss.1} parent=1 // pred_check
      _
    $region39: #{mt_loss.1} parent=1 // pred_check_branch
      %42 = sbr.rel (0) target = $region41
    $region40: #{mt_loss.1} parent=1 // pred_region
      %43 = dma.done [#allocation3], 16
    $region41: #{mt_loss.1} parent=1 // pred_fallthru
      _
    %44 = sfence
    %v45 = vld [vmem:[%s0] sm:$0xff]
    %v46 = vld [vmem:[%s2] sm:$0xff]
    %vm47 = vcmask 31744
    %v48 = vsel %vm47, %v45, -inf
    %49 = vmax.xlane.f32.xlu0 %v48
    %v50 = vpop.xlane.xlu0 %49
    %v51 = vsub.f32 %v45, %v50
    %v52 = vmul.f32 %v51, 1.442695
    %v53 = vpow.pop %v52
    %v54 = vsel %vm47, %v53, 0.0
    %55 = vadd.xlane.f32.xlu0 %v54
    %v56 = vpop.xlane.xlu0 %55
    %v57 = vlog2.pop %v56
    %v58 = vmul.f32 %v57, 0.6931472
    %v59 = vadd.f32 %v58, %v50
    %v60 = vsub.f32 %v45, %v59
    %v61 = vlaneseq
    %v62 = vand.u32 %v61, 127
    %63 = vset.pattern.permute.xlu0 0
    %64 = vperm.xlu0 %63, %v46
    %v65 = vpop.permute.xlu0 %64
    %vm66 = vcmp.eq.s32.totalorder %v62, %v65
    %v67 = vsel %vm66, 1, 0
    %v68 = vcvt.s32.f32 %v67
    %v69 = vmul.f32 %v68, %v60
    %v70 = vsel %vm47, %v69, 0.0
    %71 = vadd.xlane.f32.xlu0 %v70
    %v72 = vpop.xlane.xlu0 %71
    %v73 = vrot.slane %v72, 4
    %v74 = vadd.f32 %v72, %v73
    %v75 = vrot.slane %v74, 2
    %v76 = vadd.f32 %v74, %v75
    %v77 = vrot.slane %v76, 1
    %v78 = vadd.f32 %v76, %v77
    %v79 = vrcp.pop 8.0
    %v80 = vmul.f32 %v78, %v79
    %v81 = vmul.f32 %v80, -0.25
    %v82 = vld [vmem:[%s1] sm:$0xff]
    %v83 = vld [vmem:[%s3] sm:$0xff]
    %vm84 = vcmask 64512
    %v85 = vsel %vm84, %v82, -inf
    %86 = vmax.xlane.f32.xlu0 %v85
    %v87 = vpop.xlane.xlu0 %86
    %v88 = vsub.f32 %v82, %v87
    %v89 = vmul.f32 %v88, 1.442695
    %v90 = vpow.pop %v89
    %v91 = vsel %vm84, %v90, 0.0
    %92 = vadd.xlane.f32.xlu0 %v91
    %v93 = vpop.xlane.xlu0 %92
    %v94 = vlog2.pop %v93
    %v95 = vmul.f32 %v94, 0.6931472
    %v96 = vadd.f32 %v95, %v87
    %v97 = vsub.f32 %v82, %v96
    %98 = vset.pattern.permute.xlu0 0
    %99 = vperm.xlu0 %98, %v83
    %v100 = vpop.permute.xlu0 %99
    %vm101 = vcmp.eq.s32.totalorder %v62, %v100
    %v102 = vsel %vm101, 1, 0
    %v103 = vcvt.s32.f32 %v102
    %v104 = vmul.f32 %v103, %v97
    %v105 = vsel %vm84, %v104, 0.0
    %106 = vadd.xlane.f32.xlu0 %v105
    %v107 = vpop.xlane.xlu0 %106
    %v108 = vrot.slane %v107, 4
    %v109 = vadd.f32 %v107, %v108
    %v110 = vrot.slane %v109, 2
    %v111 = vadd.f32 %v109, %v110
    %v112 = vrot.slane %v111, 1
    %v113 = vadd.f32 %v111, %v112
    %v114 = vmul.f32 %v113, %v79
    %v115 = vmul.f32 %v114, -0.125
    %v116 = vld [vmem:[%s4] sm:$0xff]
    %v117 = vld [vmem:[%s5] sm:$0xff]
    %118 = vadd.xlane.f32.xlu0 %v116
    %v119 = vpop.xlane.xlu0 %118
    %v120 = vrcp.pop 128.0
    %v121 = vmul.f32 %v119, %v120
    %122 = vadd.xlane.f32.xlu0 %v117
    %v123 = vpop.xlane.xlu0 %122
    %v124 = vmul.f32 %v123, %v120
    %v125 = vsub.f32 %v116, %v121
    %v126 = vsub.f32 %v117, %v124
    %v127 = vmul.f32 %v125, %v125
    %128 = vadd.xlane.f32.xlu0 %v127
    %v129 = vpop.xlane.xlu0 %128
    %v130 = vmul.f32 %v129, 0.007874016
    %v131 = vmul.f32 %v126, %v126
    %132 = vadd.xlane.f32.xlu0 %v131
    %v133 = vpop.xlane.xlu0 %132
    %v134 = vmul.f32 %v133, 0.007874016
    %v135 = vmul.f32 %v125, %v126
    %136 = vadd.xlane.f32.xlu0 %v135
    %v137 = vpop.xlane.xlu0 %136
    %v138 = vmul.f32 %v137, 0.0078125
    %v139 = vmul.f32 %v138, 2.0
    %v140 = vadd.f32 %v130, %v134
    %v141 = vsub.f32 %v121, %v124
    %v142 = vmul.f32 %v141, %v141
    %v143 = vadd.f32 %v140, %v142
    %v144 = vrcp.pop %v143
    %v145 = vmul.f32 %v139, %v144
    %v146 = vrot.slane %v145, 4
    %v147 = vadd.f32 %v145, %v146
    %v148 = vrot.slane %v147, 2
    %v149 = vadd.f32 %v147, %v148
    %v150 = vrot.slane %v149, 1
    %v151 = vadd.f32 %v149, %v150
    %v152 = vmul.f32 %v151, %v79
    %v153 = vld [vmem:[%s6] sm:$0xff]
    %v154 = vld [vmem:[%s7] sm:$0xff]
    %155 = vadd.xlane.f32.xlu0 %v153
    %v156 = vpop.xlane.xlu0 %155
    %v157 = vmul.f32 %v156, %v120
    %158 = vadd.xlane.f32.xlu0 %v154
    %v159 = vpop.xlane.xlu0 %158
    %v160 = vmul.f32 %v159, %v120
    %v161 = vsub.f32 %v153, %v157
    %v162 = vsub.f32 %v154, %v160
    %v163 = vmul.f32 %v161, %v161
    %164 = vadd.xlane.f32.xlu0 %v163
    %v165 = vpop.xlane.xlu0 %164
    %v166 = vmul.f32 %v165, 0.007874016
    %v167 = vmul.f32 %v162, %v162
    %168 = vadd.xlane.f32.xlu0 %v167
    %v169 = vpop.xlane.xlu0 %168
    %v170 = vmul.f32 %v169, 0.007874016
    %v171 = vmul.f32 %v161, %v162
    %172 = vadd.xlane.f32.xlu0 %v171
    %v173 = vpop.xlane.xlu0 %172
    %v174 = vmul.f32 %v173, 0.0078125
    %v175 = vmul.f32 %v174, 2.0
    %v176 = vadd.f32 %v166, %v170
    %v177 = vsub.f32 %v157, %v160
    %v178 = vmul.f32 %v177, %v177
    %v179 = vadd.f32 %v176, %v178
    %v180 = vrcp.pop %v179
    %v181 = vmul.f32 %v175, %v180
    %v182 = vrot.slane %v181, 4
    %v183 = vadd.f32 %v181, %v182
    %v184 = vrot.slane %v183, 2
    %v185 = vadd.f32 %v183, %v184
    %v186 = vrot.slane %v185, 1
    %v187 = vadd.f32 %v185, %v186
    %v188 = vmul.f32 %v187, %v79
    %v189 = vsub.f32 1.0, %v152
    %v190 = vsub.f32 1.0, %v188
    %s191 = sld [smem:[#allocation2]]
    %s192 = sld [smem:[#allocation2 + $0x1]]
    %s193 = sld [smem:[#allocation2 + $0x2]]
    %s194 = sld [smem:[#allocation2 + $0x3]]
    %s195 = sadd.f32 %s191, %s192
    %s196 = sadd.f32 %s195, %s193
    %s197 = sadd.f32 %s196, %s194
    %vm198 = vcmp.eq.s32.totalorder %v62, 7
    %s199 = smul.f32 %s191, -2.0
    %v200 = vstv %s199
    %v201 = vsel %vm198, %v200, 0.0
    %vm202 = vcmp.eq.s32.totalorder %v62, 8
    %s203 = smul.f32 %s192, -2.0
    %v204 = vstv %s203
    %v205 = vsel %vm202, %v204, %v201
    %vm206 = vcmp.eq.s32.totalorder %v62, 9
    %s207 = smul.f32 %s193, -2.0
    %v208 = vstv %s207
    %v209 = vsel %vm206, %v208, %v205
    %vm210 = vcmp.eq.s32.totalorder %v62, 10
    %s211 = smul.f32 %s194, -2.0
    %v212 = vstv %s211
    %v213 = vsel %vm210, %v212, %v209
    %vm214 = vcmp.eq.s32.totalorder %v62, 11
    %v215 = vstv %s191
    %v216 = vsel %vm214, %v215, %v213
    %vm217 = vcmp.eq.s32.totalorder %v62, 12
    %v218 = vstv %s192
    %v219 = vsel %vm217, %v218, %v216
    %vm220 = vcmp.eq.s32.totalorder %v62, 13
    %v221 = vstv %s193
    %v222 = vsel %vm220, %v221, %v219
    %vm223 = vcmp.eq.s32.totalorder %v62, 14
    %v224 = vstv %s194
    %v225 = vsel %vm223, %v224, %v222
    %v226 = vmul.f32 %v225, 1.442695
    %v227 = vpow.pop %v226
    %vm228 = vcmp.ge.s32.totalorder %v62, 7
    %vm229 = vcmp.le.s32.totalorder %v62, 14
    %vm230 = vmand %vm228, %vm229
    %v231 = vsel %vm230, %v227, 0.0
    %v232 = vsel %vm198, %v81, 0.0
    %v233 = vsel %vm202, %v115, %v232
    %v234 = vsel %vm206, %v189, %v233
    %v235 = vsel %vm210, %v190, %v234
    %v236 = vmul.f32 %v235, %v231
    %237 = vadd.xlane.f32.xlu0 %v236
    %v238 = vpop.xlane.xlu0 %237
    %v239 = vstv %s197
    %v240 = vadd.f32 %v238, %v239
    %vm241 = vcmp.eq.s32.totalorder %v62, 0
    %v242 = vsel %vm241, %v240, %v231
    %vm243 = vcmp.eq.s32.totalorder %v62, 1
    %v244 = vsel %vm243, %v81, %v242
    %vm245 = vcmp.eq.s32.totalorder %v62, 2
    %v246 = vsel %vm245, %v115, %v244
    %vm247 = vcmp.eq.s32.totalorder %v62, 3
    %v248 = vsel %vm247, %v189, %v246
    %vm249 = vcmp.eq.s32.totalorder %v62, 4
    %v250 = vsel %vm249, %v190, %v248
    %vm251 = vcmp.eq.s32.totalorder %v62, 5
    %v252 = vsel %vm251, %v152, %v250
    %vm253 = vcmp.eq.s32.totalorder %v62, 6
    %v254 = vsel %vm253, %v188, %v252
    %255 = vst [vmem:[%s9] sm:$0x1] %v254
    // Predicated region
    $region42: #{mt_loss.1} parent=1 // pred_check
      _
    $region43: #{mt_loss.1} parent=1 // pred_check_branch
      %257 = sbr.rel (0) target = $region45
    $region44: #{mt_loss.1} parent=1 // pred_region
      _
    $region45: #{mt_loss.1} parent=1 // pred_fallthru
      _
    // Predicated region
    $region46: #{mt_loss.1} parent=1 // pred_check
      _
    $region47: #{mt_loss.1} parent=1 // pred_check_branch
      %259 = sbr.rel (0) target = $region49
    $region48: #{mt_loss.1} parent=1 // pred_region
      _
    $region49: #{mt_loss.1} parent=1 // pred_fallthru
      _
    %260 = vsyncpa [#allocation3], 1

</llo_original>
